<compile_context>
chip_gen: v7x
topology: tpu7x:2x2x1
jax: 0.10.0
libtpu: 0.0.40
codegen_flags: <defaults>
</compile_context>

<pallas_src>
import functools

import jax
import jax.numpy as jnp
from jax import lax
from jax.experimental import pallas as pl
from jax.experimental.pallas import tpu as pltpu


def _round_up(x, m):
    return ((x + m - 1) // m) * m


def _cdiv(a, b):
    return (a + b - 1) // b


def _f1_stats_kernel(y_pred_ref, y_true_ref, tp_ref, psum_ref, cnt_ref, *,
                     n_rows, tile_n, tiles_per_split, n_cls, exact):
    """Accumulate per-class (tp, tp+fp, tp+fn) partials into (8, C) slabs."""
    s = pl.program_id(0)   # split index (core-parallel on v7x megacore)
    i = pl.program_id(1)   # batch-tile index within the split (reduction axis)

    @pl.when(i == 0)
    def _():
        tp_ref[...] = jnp.zeros_like(tp_ref)
        psum_ref[...] = jnp.zeros_like(psum_ref)
        cnt_ref[...] = jnp.zeros_like(cnt_ref)

    def accumulate(mask_rows):
        x = y_pred_ref[...].astype(jnp.float32)             # (TILE_N, C)
        tgt = y_true_ref[...]                                # (TILE_N, 1) int32

        # numerically-stable softmax along the class (lane) axis; the full-tile
        # divide is replaced by a per-row reciprocal + broadcast multiply.
        m = jnp.max(x, axis=-1, keepdims=True)
        e = jnp.exp(x - m)
        prob = e * pl.reciprocal(jnp.sum(e, axis=-1, keepdims=True))

        # one-hot "hit" mask via lane-iota compare (never materialized as f32)
        col = lax.broadcasted_iota(jnp.int32, (tile_n, n_cls), 1)
        hit = col == tgt                                     # (TILE_N, C) bool

        if mask_rows:
            # ragged last tile / phantom tile: zero out rows beyond the batch
            # (their logits AND their targets are undefined).
            row0 = (s * tiles_per_split + i) * tile_n
            row = row0 + lax.broadcasted_iota(jnp.int32, (tile_n, 1), 0)
            valid = row < n_rows                             # (TILE_N, 1) bool
            prob = jnp.where(valid, prob, 0.0)
            hit = jnp.logical_and(hit, valid)

        tp_c = jnp.where(hit, prob, 0.0)                    # onehot * p
        cnt_c = jnp.where(hit, 1.0, 0.0)                    # onehot    (tp+fn)

        # sublane-shaped (8, C) accumulation: the reshape keeps the vreg layout
        # and the axis-0 sum is plain VALU adds (no per-step XLU sublane reduce)
        tp_ref[...] += tp_c.reshape(-1, 8, n_cls).sum(axis=0)
        psum_ref[...] += prob.reshape(-1, 8, n_cls).sum(axis=0)   # p   (tp+fp)
        cnt_ref[...] += cnt_c.reshape(-1, 8, n_cls).sum(axis=0)

    if exact:
        # static: the grid covers the batch exactly -> never pay for the mask
        accumulate(False)
    else:
        needs_mask = (s * tiles_per_split + i + 1) * tile_n > n_rows

        @pl.when(needs_mask)
        def _():
            accumulate(True)

        @pl.when(jnp.logical_not(needs_mask))
        def _():
            accumulate(False)


def f1_loss(y_pred, y_true, *, epsilon=1e-7, tile_n=None, num_splits=2):
    """y_pred: (N, C) float (f32 or bf16); y_true: (N,) int. Returns scalar f32."""
    n, c = y_pred.shape

    # Largest tile that fits the raised scoped-VMEM budget: with the lane-padded
    # layout each row costs ~1 KiB per buffer (512 B logits + 512 B targets),
    # double-buffered -> tile_n=8192 is ~16 MiB (< 32 MiB limit below).
    if tile_n is None:
        tile_n = min(_round_up(n, 16), 8192)
    tile_n = max(16, _round_up(tile_n, 16))   # 16: bf16 sublane-tile alignment

    num_tiles = _cdiv(n, tile_n)
    num_splits = max(1, min(num_splits, num_tiles))
    tiles_per_split = _cdiv(num_tiles, num_splits)
    exact = num_splits * tiles_per_split * tile_n == n      # no masking needed
    needs_clamp = num_splits * tiles_per_split > num_tiles  # phantom tiles

    y_true_2d = y_true.astype(jnp.int32).reshape(n, 1)

    def tile_map(split, it):
        t = split * tiles_per_split + it
        if needs_clamp:
            # Phantom tiles re-read the last real tile (fully row-masked in the
            # kernel) so no block DMA ever goes out of bounds.
            t = jnp.minimum(t, num_tiles - 1)
        return (t, 0)

    kernel = functools.partial(
        _f1_stats_kernel, n_rows=n, tile_n=tile_n,
        tiles_per_split=tiles_per_split, n_cls=c, exact=exact)

    part = jax.ShapeDtypeStruct((num_splits * 8, c), jnp.float32)
    tp_p, psum_p, cnt_p = pl.pallas_call(
        kernel,
        out_shape=(part, part, part),
        grid_spec=pltpu.PrefetchScalarGridSpec(
            num_scalar_prefetch=0,
            grid=(num_splits, tiles_per_split),
            in_specs=[
                pl.BlockSpec((tile_n, c), tile_map),
                pl.BlockSpec((tile_n, 1), tile_map),
            ],
            out_specs=[
                pl.BlockSpec((8, c), lambda s, it: (s, 0)),
                pl.BlockSpec((8, c), lambda s, it: (s, 0)),
                pl.BlockSpec((8, c), lambda s, it: (s, 0)),
            ],
        ),
        compiler_params=pltpu.CompilerParams(
            dimension_semantics=("parallel", "arbitrary"),
            vmem_limit_bytes=32 * 1024 * 1024,
        ),
    )(y_pred, y_true_2d)

    # Tiny finalize over C classes in the wrapper (per the v7x feedback), so the
    # batch splits / cores never synchronize inside the kernel.
    tp = jnp.sum(tp_p, axis=0)
    tp_fp = jnp.sum(psum_p, axis=0)
    tp_fn = jnp.sum(cnt_p, axis=0)
    precision = tp / (tp_fp + epsilon)
    recall = tp / (tp_fn + epsilon)
    f1 = 2.0 * precision * recall / (precision + recall + epsilon)
    f1 = jnp.clip(f1, epsilon, 1.0 - epsilon)
    return 1.0 - jnp.mean(f1)


def _f1_loss_ref(y_pred, y_true, classes, epsilon=1e-7):
    """Pure-JAX reference matching the PyTorch F1Loss.forward exactly."""
    y_true_oh = jax.nn.one_hot(y_true, classes, dtype=jnp.float32)
    p = jax.nn.softmax(y_pred.astype(jnp.float32), axis=1)
    tp = jnp.sum(y_true_oh * p, axis=0)
    fp = jnp.sum((1.0 - y_true_oh) * p, axis=0)
    fn = jnp.sum(y_true_oh * (1.0 - p), axis=0)
    precision = tp / (tp + fp + epsilon)
    recall = tp / (tp + fn + epsilon)
    f1 = 2.0 * precision * recall / (precision + recall + epsilon)
    f1 = jnp.clip(f1, epsilon, 1.0 - epsilon)
    return 1.0 - jnp.mean(f1)


if __name__ == "__main__":
    key = jax.random.PRNGKey(0)
    k1, k2 = jax.random.split(key)

    # classes=18 matches the module default; batch=45 exercises the ragged tile.
    N, C = 45, 18
    y_pred = jax.random.normal(k1, (N, C), dtype=jnp.float32)
    y_true = jax.random.randint(k2, (N,), 0, C, dtype=jnp.int32)

    # 2-split multi-tile path: grid (2, 2) -> logical tiles 0..3; tile 2 is
    # ragged (rows 32..44 valid), tile 3 is a phantom (clamped + fully masked).
    loss = f1_loss(y_pred, y_true, epsilon=1e-7, tile_n=16)
    jax.block_until_ready(loss)
    ref = _f1_loss_ref(y_pred, y_true, classes=C, epsilon=1e-7)
    assert jnp.allclose(loss, ref, rtol=1e-5, atol=1e-5), (loss, ref)

    # default-tile single-split path with bf16 logits (cast to f32 in-kernel)
    loss_bf16 = f1_loss(y_pred.astype(jnp.bfloat16), y_true, epsilon=1e-7)
    jax.block_until_ready(loss_bf16)
    ref_bf16 = _f1_loss_ref(y_pred.astype(jnp.bfloat16), y_true, classes=C,
                            epsilon=1e-7)
    assert jnp.allclose(loss_bf16, ref_bf16, rtol=1e-5, atol=1e-5), (loss_bf16, ref_bf16)

    print("KERNEL_OK")
</pallas_src>

<mosaic_0001>
module attributes {stable_mosaic.version = 11 : i64} {
  func.func @_f1_stats_kernel(%arg0: i32, %arg1: i32, %arg2: memref<16x18xf32, #tpu.memory_space<vmem>>, %arg3: memref<16x1xi32, #tpu.memory_space<vmem>>, %arg4: memref<8x18xf32, #tpu.memory_space<vmem>>, %arg5: memref<8x18xf32, #tpu.memory_space<vmem>>, %arg6: memref<8x18xf32, #tpu.memory_space<vmem>>) attributes {dimension_semantics = [#tpu.dimension_semantics<parallel>, #tpu.dimension_semantics<arbitrary>], iteration_bounds = array<i64: 2, 2>, scalar_prefetch = 0 : i64, scratch_operands = 0 : i64, tpu.core_type = #tpu.core_type<tc>, window_params = [{transform_indices = @transform_0, window_bounds = array<i64: 16, 18>}, {transform_indices = @transform_1, window_bounds = array<i64: 16, 1>}, {transform_indices = @transform_2, window_bounds = array<i64: 8, 18>}, {transform_indices = @transform_3, window_bounds = array<i64: 8, 18>}, {transform_indices = @transform_4, window_bounds = array<i64: 8, 18>}]} {
    %c0_i32 = arith.constant 0 : i32
    %0 = arith.cmpi eq, %arg1, %c0_i32 : i32
    %1 = arith.extui %0 : i1 to i32
    %c0_i32_0 = arith.constant 0 : i32
    %2 = arith.cmpi ne, %1, %c0_i32_0 : i32
    scf.if %2 {
      %cst = arith.constant 0.000000e+00 : f32
      %13 = vector.broadcast %cst : f32 to vector<8x18xf32>
      %c0 = arith.constant 0 : index
      %c0_3 = arith.constant 0 : index
      %14 = vector.load %arg4[%c0, %c0_3] : memref<8x18xf32, #tpu.memory_space<vmem>>, vector<8x18xf32>
      tpu.vector_store %arg4[%c0, %c0_3], %13 {strides = array<i32>} : memref<8x18xf32, #tpu.memory_space<vmem>>, vector<8x18xf32>,
      %cst_4 = arith.constant 0.000000e+00 : f32
      %15 = vector.broadcast %cst_4 : f32 to vector<8x18xf32>
      %c0_5 = arith.constant 0 : index
      %c0_6 = arith.constant 0 : index
      %16 = vector.load %arg5[%c0_5, %c0_6] : memref<8x18xf32, #tpu.memory_space<vmem>>, vector<8x18xf32>
      tpu.vector_store %arg5[%c0_5, %c0_6], %15 {strides = array<i32>} : memref<8x18xf32, #tpu.memory_space<vmem>>, vector<8x18xf32>,
      %cst_7 = arith.constant 0.000000e+00 : f32
      %17 = vector.broadcast %cst_7 : f32 to vector<8x18xf32>
      %c0_8 = arith.constant 0 : index
      %c0_9 = arith.constant 0 : index
      %18 = vector.load %arg6[%c0_8, %c0_9] : memref<8x18xf32, #tpu.memory_space<vmem>>, vector<8x18xf32>
      tpu.vector_store %arg6[%c0_8, %c0_9], %17 {strides = array<i32>} : memref<8x18xf32, #tpu.memory_space<vmem>>, vector<8x18xf32>,
    } else {
    }
    %c2_i32 = arith.constant 2 : i32
    %3 = arith.muli %arg0, %c2_i32 : i32
    %4 = arith.addi %3, %arg1 : i32
    %c1_i32 = arith.constant 1 : i32
    %5 = arith.addi %4, %c1_i32 : i32
    %c16_i32 = arith.constant 16 : i32
    %6 = arith.muli %5, %c16_i32 : i32
    %c45_i32 = arith.constant 45 : i32
    %7 = arith.cmpi sgt, %6, %c45_i32 : i32
    %8 = arith.extui %7 : i1 to i32
    %c0_i32_1 = arith.constant 0 : i32
    %9 = arith.cmpi ne, %8, %c0_i32_1 : i32
    scf.if %9 {
      %c0 = arith.constant 0 : index
      %c0_3 = arith.constant 0 : index
      %13 = vector.load %arg2[%c0, %c0_3] : memref<16x18xf32, #tpu.memory_space<vmem>>, vector<16x18xf32>
      %c0_4 = arith.constant 0 : index
      %c0_5 = arith.constant 0 : index
      %14 = vector.load %arg3[%c0_4, %c0_5] : memref<16x1xi32, #tpu.memory_space<vmem>>, vector<16x1xi32>
      %cst = arith.constant dense<0xFF800000> : vector<16xf32>
      %15 = vector.multi_reduction <maximumf>, %13, %cst [1] : vector<16x18xf32> to vector<16xf32>
      %16 = vector.shape_cast %15 : vector<16xf32> to vector<16x1xf32>
      %17 = vector.broadcast %16 : vector<16x1xf32> to vector<16x18xf32>
      %18 = arith.subf %13, %17 : vector<16x18xf32>
      %19 = math.exp %18 : vector<16x18xf32>
      %cst_6 = arith.constant dense<0.000000e+00> : vector<16xf32>
      %20 = vector.multi_reduction <add>, %19, %cst_6 [1] : vector<16x18xf32> to vector<16xf32>
      %21 = vector.shape_cast %20 : vector<16xf32> to vector<16x1xf32>
      %22 = tpu.reciprocal %21 : vector<16x1xf32> -> vector<16x1xf32>
      %23 = vector.broadcast %22 : vector<16x1xf32> to vector<16x18xf32>
      %24 = arith.mulf %19, %23 : vector<16x18xf32>
      %25 = tpu.iota {dimensions = array<i32: 1>} : vector<16x18xi32>
      %26 = vector.broadcast %14 : vector<16x1xi32> to vector<16x18xi32>
      %27 = arith.cmpi eq, %25, %26 : vector<16x18xi32>
      %c2_i32_7 = arith.constant 2 : i32
      %28 = arith.muli %arg0, %c2_i32_7 : i32
      %29 = arith.addi %28, %arg1 : i32
      %c16_i32_8 = arith.constant 16 : i32
      %30 = arith.muli %29, %c16_i32_8 : i32
      %31 = tpu.iota {dimensions = array<i32: 0>} : vector<16x1xi32>
      %32 = vector.broadcast %30 : i32 to vector<16x1xi32>
      %33 = arith.addi %32, %31 : vector<16x1xi32>
      %c45_i32_9 = arith.constant 45 : i32
      %34 = vector.broadcast %c45_i32_9 : i32 to vector<16x1xi32>
      %35 = arith.cmpi slt, %33, %34 : vector<16x1xi32>
      %cst_10 = arith.constant 0.000000e+00 : f32
      %36 = vector.shape_cast %35 : vector<16x1xi1> to vector<16x1xi1>
      %37 = vector.broadcast %36 : vector<16x1xi1> to vector<16x18xi1>
      %38 = vector.broadcast %cst_10 : f32 to vector<16x18xf32>
      %39 = arith.select %37, %24, %38 : vector<16x18xi1>, vector<16x18xf32>
      %40 = vector.broadcast %35 : vector<16x1xi1> to vector<16x18xi1>
      %41 = arith.andi %27, %40 : vector<16x18xi1>
      %cst_11 = arith.constant 0.000000e+00 : f32
      %42 = vector.broadcast %cst_11 : f32 to vector<16x18xf32>
      %43 = arith.select %41, %39, %42 : vector<16x18xi1>, vector<16x18xf32>
      %cst_12 = arith.constant 1.000000e+00 : f32
      %cst_13 = arith.constant 0.000000e+00 : f32
      %44 = vector.broadcast %cst_12 : f32 to vector<16x18xf32>
      %45 = vector.broadcast %cst_13 : f32 to vector<16x18xf32>
      %46 = arith.select %41, %44, %45 : vector<16x18xi1>, vector<16x18xf32>
      %c0_14 = arith.constant 0 : index
      %c0_15 = arith.constant 0 : index
      %47 = vector.load %arg4[%c0_14, %c0_15] : memref<8x18xf32, #tpu.memory_space<vmem>>, vector<8x18xf32>
      %48 = vector.shape_cast %43 : vector<16x18xf32> to vector<2x8x18xf32>
      %cst_16 = arith.constant dense<0.000000e+00> : vector<8x18xf32>
      %49 = vector.multi_reduction <add>, %48, %cst_16 [0] : vector<2x8x18xf32> to vector<8x18xf32>
      %50 = arith.addf %47, %49 : vector<8x18xf32>
      %c0_17 = arith.constant 0 : index
      %c0_18 = arith.constant 0 : index
      %51 = vector.load %arg4[%c0_17, %c0_18] : memref<8x18xf32, #tpu.memory_space<vmem>>, vector<8x18xf32>
      tpu.vector_store %arg4[%c0_17, %c0_18], %50 {strides = array<i32>} : memref<8x18xf32, #tpu.memory_space<vmem>>, vector<8x18xf32>,
      %c0_19 = arith.constant 0 : index
      %c0_20 = arith.constant 0 : index
      %52 = vector.load %arg5[%c0_19, %c0_20] : memref<8x18xf32, #tpu.memory_space<vmem>>, vector<8x18xf32>
      %53 = vector.shape_cast %39 : vector<16x18xf32> to vector<2x8x18xf32>
      %cst_21 = arith.constant dense<0.000000e+00> : vector<8x18xf32>
      %54 = vector.multi_reduction <add>, %53, %cst_21 [0] : vector<2x8x18xf32> to vector<8x18xf32>
      %55 = arith.addf %52, %54 : vector<8x18xf32>
      %c0_22 = arith.constant 0 : index
      %c0_23 = arith.constant 0 : index
      %56 = vector.load %arg5[%c0_22, %c0_23] : memref<8x18xf32, #tpu.memory_space<vmem>>, vector<8x18xf32>
      tpu.vector_store %arg5[%c0_22, %c0_23], %55 {strides = array<i32>} : memref<8x18xf32, #tpu.memory_space<vmem>>, vector<8x18xf32>,
      %c0_24 = arith.constant 0 : index
      %c0_25 = arith.constant 0 : index
      %57 = vector.load %arg6[%c0_24, %c0_25] : memref<8x18xf32, #tpu.memory_space<vmem>>, vector<8x18xf32>
      %58 = vector.shape_cast %46 : vector<16x18xf32> to vector<2x8x18xf32>
      %cst_26 = arith.constant dense<0.000000e+00> : vector<8x18xf32>
      %59 = vector.multi_reduction <add>, %58, %cst_26 [0] : vector<2x8x18xf32> to vector<8x18xf32>
      %60 = arith.addf %57, %59 : vector<8x18xf32>
      %c0_27 = arith.constant 0 : index
      %c0_28 = arith.constant 0 : index
      %61 = vector.load %arg6[%c0_27, %c0_28] : memref<8x18xf32, #tpu.memory_space<vmem>>, vector<8x18xf32>
      tpu.vector_store %arg6[%c0_27, %c0_28], %60 {strides = array<i32>} : memref<8x18xf32, #tpu.memory_space<vmem>>, vector<8x18xf32>,
    } else {
    }
    %true = arith.constant true
    %10 = arith.xori %7, %true : i1
    %11 = arith.extui %10 : i1 to i32
    %c0_i32_2 = arith.constant 0 : i32
    %12 = arith.cmpi ne, %11, %c0_i32_2 : i32
    scf.if %12 {
      %c0 = arith.constant 0 : index
      %c0_3 = arith.constant 0 : index
      %13 = vector.load %arg2[%c0, %c0_3] : memref<16x18xf32, #tpu.memory_space<vmem>>, vector<16x18xf32>
      %c0_4 = arith.constant 0 : index
      %c0_5 = arith.constant 0 : index
      %14 = vector.load %arg3[%c0_4, %c0_5] : memref<16x1xi32, #tpu.memory_space<vmem>>, vector<16x1xi32>
      %cst = arith.constant dense<0xFF800000> : vector<16xf32>
      %15 = vector.multi_reduction <maximumf>, %13, %cst [1] : vector<16x18xf32> to vector<16xf32>
      %16 = vector.shape_cast %15 : vector<16xf32> to vector<16x1xf32>
      %17 = vector.broadcast %16 : vector<16x1xf32> to vector<16x18xf32>
      %18 = arith.subf %13, %17 : vector<16x18xf32>
      %19 = math.exp %18 : vector<16x18xf32>
      %cst_6 = arith.constant dense<0.000000e+00> : vector<16xf32>
      %20 = vector.multi_reduction <add>, %19, %cst_6 [1] : vector<16x18xf32> to vector<16xf32>
      %21 = vector.shape_cast %20 : vector<16xf32> to vector<16x1xf32>
      %22 = tpu.reciprocal %21 : vector<16x1xf32> -> vector<16x1xf32>
      %23 = vector.broadcast %22 : vector<16x1xf32> to vector<16x18xf32>
      %24 = arith.mulf %19, %23 : vector<16x18xf32>
      %25 = tpu.iota {dimensions = array<i32: 1>} : vector<16x18xi32>
      %26 = vector.broadcast %14 : vector<16x1xi32> to vector<16x18xi32>
      %27 = arith.cmpi eq, %25, %26 : vector<16x18xi32>
      %cst_7 = arith.constant 0.000000e+00 : f32
      %28 = vector.broadcast %cst_7 : f32 to vector<16x18xf32>
      %29 = arith.select %27, %24, %28 : vector<16x18xi1>, vector<16x18xf32>
      %cst_8 = arith.constant 1.000000e+00 : f32
      %cst_9 = arith.constant 0.000000e+00 : f32
      %30 = vector.broadcast %cst_8 : f32 to vector<16x18xf32>
      %31 = vector.broadcast %cst_9 : f32 to vector<16x18xf32>
      %32 = arith.select %27, %30, %31 : vector<16x18xi1>, vector<16x18xf32>
      %c0_10 = arith.constant 0 : index
      %c0_11 = arith.constant 0 : index
      %33 = vector.load %arg4[%c0_10, %c0_11] : memref<8x18xf32, #tpu.memory_space<vmem>>, vector<8x18xf32>
      %34 = vector.shape_cast %29 : vector<16x18xf32> to vector<2x8x18xf32>
      %cst_12 = arith.constant dense<0.000000e+00> : vector<8x18xf32>
      %35 = vector.multi_reduction <add>, %34, %cst_12 [0] : vector<2x8x18xf32> to vector<8x18xf32>
      %36 = arith.addf %33, %35 : vector<8x18xf32>
      %c0_13 = arith.constant 0 : index
      %c0_14 = arith.constant 0 : index
      %37 = vector.load %arg4[%c0_13, %c0_14] : memref<8x18xf32, #tpu.memory_space<vmem>>, vector<8x18xf32>
      tpu.vector_store %arg4[%c0_13, %c0_14], %36 {strides = array<i32>} : memref<8x18xf32, #tpu.memory_space<vmem>>, vector<8x18xf32>,
      %c0_15 = arith.constant 0 : index
      %c0_16 = arith.constant 0 : index
      %38 = vector.load %arg5[%c0_15, %c0_16] : memref<8x18xf32, #tpu.memory_space<vmem>>, vector<8x18xf32>
      %39 = vector.shape_cast %24 : vector<16x18xf32> to vector<2x8x18xf32>
      %cst_17 = arith.constant dense<0.000000e+00> : vector<8x18xf32>
      %40 = vector.multi_reduction <add>, %39, %cst_17 [0] : vector<2x8x18xf32> to vector<8x18xf32>
      %41 = arith.addf %38, %40 : vector<8x18xf32>
      %c0_18 = arith.constant 0 : index
      %c0_19 = arith.constant 0 : index
      %42 = vector.load %arg5[%c0_18, %c0_19] : memref<8x18xf32, #tpu.memory_space<vmem>>, vector<8x18xf32>
      tpu.vector_store %arg5[%c0_18, %c0_19], %41 {strides = array<i32>} : memref<8x18xf32, #tpu.memory_space<vmem>>, vector<8x18xf32>,
      %c0_20 = arith.constant 0 : index
      %c0_21 = arith.constant 0 : index
      %43 = vector.load %arg6[%c0_20, %c0_21] : memref<8x18xf32, #tpu.memory_space<vmem>>, vector<8x18xf32>
      %44 = vector.shape_cast %32 : vector<16x18xf32> to vector<2x8x18xf32>
      %cst_22 = arith.constant dense<0.000000e+00> : vector<8x18xf32>
      %45 = vector.multi_reduction <add>, %44, %cst_22 [0] : vector<2x8x18xf32> to vector<8x18xf32>
      %46 = arith.addf %43, %45 : vector<8x18xf32>
      %c0_23 = arith.constant 0 : index
      %c0_24 = arith.constant 0 : index
      %47 = vector.load %arg6[%c0_23, %c0_24] : memref<8x18xf32, #tpu.memory_space<vmem>>, vector<8x18xf32>
      tpu.vector_store %arg6[%c0_23, %c0_24], %46 {strides = array<i32>} : memref<8x18xf32, #tpu.memory_space<vmem>>, vector<8x18xf32>,
    } else {
    }
    return
  }
  func.func @transform_0(%arg0: i32, %arg1: i32) -> (i32, i32) {
    %c2_i32 = arith.constant 2 : i32
    %0 = arith.muli %arg0, %c2_i32 : i32
    %1 = arith.addi %0, %arg1 : i32
    %c2_i32_0 = arith.constant 2 : i32
    %2 = arith.minsi %1, %c2_i32_0 : i32
    %c0_i32 = arith.constant 0 : i32
    %c0_i32_1 = arith.constant 0 : i32
    return %2, %c0_i32 : i32, i32
  }
  func.func @transform_1(%arg0: i32, %arg1: i32) -> (i32, i32) {
    %c2_i32 = arith.constant 2 : i32
    %0 = arith.muli %arg0, %c2_i32 : i32
    %1 = arith.addi %0, %arg1 : i32
    %c2_i32_0 = arith.constant 2 : i32
    %2 = arith.minsi %1, %c2_i32_0 : i32
    %c0_i32 = arith.constant 0 : i32
    %c0_i32_1 = arith.constant 0 : i32
    return %2, %c0_i32 : i32, i32
  }
  func.func @transform_2(%arg0: i32, %arg1: i32) -> (i32, i32) {
    %c0_i32 = arith.constant 0 : i32
    %c0_i32_0 = arith.constant 0 : i32
    return %arg0, %c0_i32 : i32, i32
  }
  func.func @transform_3(%arg0: i32, %arg1: i32) -> (i32, i32) {
    %c0_i32 = arith.constant 0 : i32
    %c0_i32_0 = arith.constant 0 : i32
    return %arg0, %c0_i32 : i32, i32
  }
  func.func @transform_4(%arg0: i32, %arg1: i32) -> (i32, i32) {
    %c0_i32 = arith.constant 0 : i32
    %c0_i32_0 = arith.constant 0 : i32
    return %arg0, %c0_i32 : i32, i32
  }
}

</mosaic_0001>

<llo_original>
// kernel: tpu_custom_call.1
$region0: #{tpu_custom_call.1}
  #allocation0 [shape = 'u32[]', space=smem, size = 0x4, offset = 0x4, fixed_abs, tag = 'smem constant byte address 0x4 - core index']
  #allocation1 [shape = 'u32[144,128]{1,0:T(1,128)}', space=vmem, size = 0x12000, scoped, tag = 'internal scratch']
  %s0 = inlined_call_operand.vmem [shape: f32[45,18], index: 0, kind: input, shape index: {}]
  %s1 = inlined_call_operand.vmem [shape: s32[45,1], index: 1, kind: input, shape index: {}]
  %s2 = inlined_call_operand.hbm [shape: f32[16,18], index: 2, kind: output, shape index: {0}]
  %s3 = inlined_call_operand.hbm [shape: f32[16,18], index: 3, kind: output, shape index: {1}]
  %s4 = inlined_call_operand.hbm [shape: f32[16,18], index: 4, kind: output, shape index: {2}]
  %5 = xla_tuple %s2, %s3, %s4
  %s6 = sld [smem:[#allocation0]]
  $region69: #{tpu_custom_call.1} parent=0
    _
  %s8 = ssub.s32 1, %s6
  %s9 = scalar_select 0, %s8, %s6
  $region1: #{tpu_custom_call.1} parent=0
    #allocation2 [shape = 'u8[8192]{0}', space=vmem, size = 0x2000, scoped, tag = 'output window, operand 0']
    #allocation3 [shape = 's32[2]{0}', space=sflag, size = 0x8, scoped, tag = 'scoped memory for tpu_custom_call.1']
    #allocation4 [shape = 'u8[8192]{0}', space=vmem, size = 0x2000, scoped, tag = 'output window, operand 1']
    #allocation5 [shape = 's32[2]{0}', space=sflag, size = 0x8, scoped, tag = 'scoped memory for tpu_custom_call.1']
    #allocation6 [shape = 'u8[8192]{0}', space=vmem, size = 0x2000, scoped, tag = 'output window, operand 2']
    %10 = vsyncpa [#allocation3], 0
    %s11 = scalar_lea.sflag [#allocation3], 1
    %12 = vsyncpa %s11, 0
    %13 = vsyncpa [#allocation5], 0
    %s14 = scalar_lea.sflag [#allocation5], 1
    %15 = vsyncpa %s14, 0
    loop: start=0, step=1, limit=6
    $region2: #{tpu_custom_call.1} parent=1 // loop_pre_header
      _
    $region3: #{tpu_custom_call.1} parent=1 // loop_header
      %s17 = sphi 0, %s21
      %p18 = scmp.ge.s32.totalorder %s17, 6
      %s24 = sphi 0, %s36
      %s25 = sphi 0, %s32
      %s26 = sphi 0, %s24
      %s27 = sphi 0, %s25
      %s28 = sphi 0, %s26
      %s29 = sphi 0, %s27
      %s47 = sphi 0, %s49
      %s50 = sphi 0, %s47
      %s51 = sphi 0, %s50
      %s67 = sphi 0, %s51
      %s81 = sphi 0, %s83
      %s84 = sphi 0, %s81
      %s85 = sphi 0, %s84
      %s101 = sphi 0, %s85
      %s107 = sphi 0, %s109
      %s110 = sphi 0, %s107
      %s111 = sphi 0, %s110
      %s127 = sphi 0, %s111
      %s133 = sphi 0, %s135
      %s136 = sphi 0, %s133
      %s137 = sphi 0, %s136
      %s153 = sphi 0, %s137
      %s159 = sphi 0, %s161
      %s162 = sphi 0, %s159
      %s163 = sphi 0, %s162
      %s179 = sphi 0, %s163
    $region4: #{tpu_custom_call.1} parent=1 // loop_header_branch
      %20 = sbr.rel (%p18) target = $region8
    $region5: #{tpu_custom_call.1} parent=1 // loop_body
      %s22 = ssub.s32 %s17, 1
      %s23 = ssub.s32 %s17, 2
      %s30 = sadd.s32 1, %s25
      %p31 = scmp.ge.s32.totalorder %s30, 2
      %s32 = scalar_select %p31, 0, %s30
      %s33 = sadd.s32 1, %s24
      %s34 = scalar_select %p31, %s33, %s24
      %p35 = scmp.ge.s32.totalorder %s34, 2
      %s36 = scalar_select %p35, 0, %s34
      %s37 = smul.u32 %s24, 2
      %s38 = sadd.s32 %s37, %s25
      %p39 = scmp.lt.s32.totalorder %s38, 2
      %s40 = scalar_select %p39, %s38, 2
      %s41 = smul.u32 %s36, 2
      %s42 = sadd.s32 %s41, %s32
      %p43 = scmp.lt.s32.totalorder %s42, 2
      %s44 = scalar_select %p43, %s42, 2
      %s45 = ssub.s32 %s40, %s44
      %p46 = scmp.eq.s32.totalorder %s45, 0
      %s48 = sadd.s32 %s47, 1
      %s49 = scalar_select %p46, %s47, %s48
      %p52 = pneg %p46
      %p53 = scmp.eq.s32.totalorder %s17, 3
      %p54 = por %p52, %p53
      %p55 = scmp.ne.s32.totalorder %s47, %s50
      %p56 = scmp.eq.s32.totalorder %s17, 0
      %p57 = por %p55, %p56
      %p58 = scmp.ne.s32.totalorder %s47, %s50
      %p59 = scmp.eq.s32.totalorder %s22, 3
      %p60 = por %p58, %p59
      %p61 = scmp.ne.s32.totalorder %s50, %s51
      %p62 = scmp.eq.s32.totalorder %s22, 0
      %p63 = por %p61, %p62
      %p64 = scmp.ne.s32.totalorder %s50, %s51
      %p65 = scmp.eq.s32.totalorder %s23, 3
      %p66 = por %p64, %p65
      %p68 = scmp.ne.s32.totalorder %s51, %s67
      %p69 = scmp.eq.s32.totalorder %s23, 0
      %p70 = por %p68, %p69
      %s71 = smul.u32 %s24, 2
      %s72 = sadd.s32 %s71, %s25
      %p73 = scmp.lt.s32.totalorder %s72, 2
      %s74 = scalar_select %p73, %s72, 2
      %s75 = smul.u32 %s36, 2
      %s76 = sadd.s32 %s75, %s32
      %p77 = scmp.lt.s32.totalorder %s76, 2
      %s78 = scalar_select %p77, %s76, 2
      %s79 = ssub.s32 %s74, %s78
      %p80 = scmp.eq.s32.totalorder %s79, 0
      %s82 = sadd.s32 %s81, 1
      %s83 = scalar_select %p80, %s81, %s82
      %p86 = pneg %p80
      %p87 = scmp.eq.s32.totalorder %s17, 3
      %p88 = por %p86, %p87
      %p89 = scmp.ne.s32.totalorder %s81, %s84
      %p90 = scmp.eq.s32.totalorder %s17, 0
      %p91 = por %p89, %p90
      %p92 = scmp.ne.s32.totalorder %s81, %s84
      %p93 = scmp.eq.s32.totalorder %s22, 3
      %p94 = por %p92, %p93
      %p95 = scmp.ne.s32.totalorder %s84, %s85
      %p96 = scmp.eq.s32.totalorder %s22, 0
      %p97 = por %p95, %p96
      %p98 = scmp.ne.s32.totalorder %s84, %s85
      %p99 = scmp.eq.s32.totalorder %s23, 3
      %p100 = por %p98, %p99
      %p102 = scmp.ne.s32.totalorder %s85, %s101
      %p103 = scmp.eq.s32.totalorder %s23, 0
      %p104 = por %p102, %p103
      %s105 = ssub.s32 %s24, %s36
      %p106 = scmp.eq.s32.totalorder %s105, 0
      %s108 = sadd.s32 %s107, 1
      %s109 = scalar_select %p106, %s107, %s108
      %p112 = pneg %p106
      %p113 = scmp.eq.s32.totalorder %s17, 3
      %p114 = por %p112, %p113
      %p115 = scmp.ne.s32.totalorder %s107, %s110
      %p116 = scmp.eq.s32.totalorder %s17, 0
      %p117 = por %p115, %p116
      %p118 = scmp.ne.s32.totalorder %s107, %s110
      %p119 = scmp.eq.s32.totalorder %s22, 3
      %p120 = por %p118, %p119
      %p121 = scmp.ne.s32.totalorder %s110, %s111
      %p122 = scmp.eq.s32.totalorder %s22, 0
      %p123 = por %p121, %p122
      %p124 = scmp.ne.s32.totalorder %s110, %s111
      %p125 = scmp.eq.s32.totalorder %s23, 3
      %p126 = por %p124, %p125
      %p128 = scmp.ne.s32.totalorder %s111, %s127
      %p129 = scmp.eq.s32.totalorder %s23, 0
      %p130 = por %p128, %p129
      %s131 = ssub.s32 %s24, %s36
      %p132 = scmp.eq.s32.totalorder %s131, 0
      %s134 = sadd.s32 %s133, 1
      %s135 = scalar_select %p132, %s133, %s134
      %p138 = pneg %p132
      %p139 = scmp.eq.s32.totalorder %s17, 3
      %p140 = por %p138, %p139
      %p141 = scmp.ne.s32.totalorder %s133, %s136
      %p142 = scmp.eq.s32.totalorder %s17, 0
      %p143 = por %p141, %p142
      %p144 = scmp.ne.s32.totalorder %s133, %s136
      %p145 = scmp.eq.s32.totalorder %s22, 3
      %p146 = por %p144, %p145
      %p147 = scmp.ne.s32.totalorder %s136, %s137
      %p148 = scmp.eq.s32.totalorder %s22, 0
      %p149 = por %p147, %p148
      %p150 = scmp.ne.s32.totalorder %s136, %s137
      %p151 = scmp.eq.s32.totalorder %s23, 3
      %p152 = por %p150, %p151
      %p154 = scmp.ne.s32.totalorder %s137, %s153
      %p155 = scmp.eq.s32.totalorder %s23, 0
      %p156 = por %p154, %p155
      %s157 = ssub.s32 %s24, %s36
      %p158 = scmp.eq.s32.totalorder %s157, 0
      %s160 = sadd.s32 %s159, 1
      %s161 = scalar_select %p158, %s159, %s160
      %p164 = pneg %p158
      %p165 = scmp.eq.s32.totalorder %s17, 3
      %p166 = por %p164, %p165
      %p167 = scmp.ne.s32.totalorder %s159, %s162
      %p168 = scmp.eq.s32.totalorder %s17, 0
      %p169 = por %p167, %p168
      %p170 = scmp.ne.s32.totalorder %s159, %s162
      %p171 = scmp.eq.s32.totalorder %s22, 3
      %p172 = por %p170, %p171
      %p173 = scmp.ne.s32.totalorder %s162, %s163
      %p174 = scmp.eq.s32.totalorder %s22, 0
      %p175 = por %p173, %p174
      %p176 = scmp.ne.s32.totalorder %s162, %s163
      %p177 = scmp.eq.s32.totalorder %s23, 3
      %p178 = por %p176, %p177
      %p180 = scmp.ne.s32.totalorder %s163, %s179
      %p181 = scmp.eq.s32.totalorder %s23, 0
      %p182 = por %p180, %p181
      %p183 = scmp.le.s32.totalorder 1, %s17
      %p184 = scmp.lt.s32.totalorder %s17, 5
      %p185 = pnand %p183, %p184
      %p186 = pneg %p185
      // Predicated region
      $region9: #{tpu_custom_call.1} parent=5 // pred_check
        _
      $region10: #{tpu_custom_call.1} parent=5 // pred_check_branch
        %188 = sbr.rel (%p185) target = $region12
      $region11: #{tpu_custom_call.1} parent=5 // pred_region
        %s189 = ssub.s32 %s17, 1
      $region12: #{tpu_custom_call.1} parent=5 // pred_fallthru
        _
      %p190 = scmp.lt.s32.totalorder %s17, 4
      // Predicated region
      $region13: #{tpu_custom_call.1} parent=5 // pred_check
        %p191 = pneg %p190
      $region14: #{tpu_custom_call.1} parent=5 // pred_check_branch
        %193 = sbr.rel (%p191) target = $region16
      $region15: #{tpu_custom_call.1} parent=5 // pred_region
        // Predicated region
        $region17: #{tpu_custom_call.1} parent=15 // pred_check
          %p194 = pneg %p57
        $region18: #{tpu_custom_call.1} parent=15 // pred_check_branch
          %196 = sbr.rel (%p194) target = $region20
        $region19: #{tpu_custom_call.1} parent=15 // pred_region
          %s197 = smul.u32 %s24, 2
          %s198 = sadd.s32 %s197, %s25
          %p199 = scmp.lt.s32.totalorder %s198, 2
          %s200 = scalar_select %p199, %s198, 2
          %s201 = smul.u32 2, %s200
          %p202 = scmp.lt.s32.totalorder %s201, 5
          %s203 = scalar_select %p202, %s201, 5
          %s204 = smul.addr %s203, 8
          %s205 = scalar_lea.vmem %s0, %s204
          %s206 = smul.u32 %s24, 2
          %s207 = sadd.s32 %s206, %s25
          %p208 = scmp.lt.s32.totalorder %s207, 2
          %s209 = scalar_select %p208, %s207, 2
          %s210 = smul.u32 2, %s209
        $region20: #{tpu_custom_call.1} parent=15 // pred_fallthru
          _
        // Predicated region
        $region21: #{tpu_custom_call.1} parent=15 // pred_check
          %p211 = pneg %p91
        $region22: #{tpu_custom_call.1} parent=15 // pred_check_branch
          %213 = sbr.rel (%p211) target = $region24
        $region23: #{tpu_custom_call.1} parent=15 // pred_region
          %s214 = smul.u32 %s24, 2
          %s215 = sadd.s32 %s214, %s25
          %p216 = scmp.lt.s32.totalorder %s215, 2
          %s217 = scalar_select %p216, %s215, 2
          %s218 = smul.u32 2, %s217
          %p219 = scmp.lt.s32.totalorder %s218, 5
          %s220 = scalar_select %p219, %s218, 5
          %s221 = smul.addr %s220, 8
          %s222 = scalar_lea.vmem %s1, %s221
          %s223 = smul.u32 %s24, 2
          %s224 = sadd.s32 %s223, %s25
          %p225 = scmp.lt.s32.totalorder %s224, 2
          %s226 = scalar_select %p225, %s224, 2
          %s227 = smul.u32 2, %s226
        $region24: #{tpu_custom_call.1} parent=15 // pred_fallthru
          _
      $region16: #{tpu_custom_call.1} parent=5 // pred_fallthru
        _
      %p228 = scmp.le.s32.totalorder 1, %s17
      %p229 = scmp.lt.s32.totalorder %s17, 5
      %p230 = pnand %p228, %p229
      %p231 = pneg %p230
      // Predicated region
      $region25: #{tpu_custom_call.1} parent=5 // pred_check
        _
      $region26: #{tpu_custom_call.1} parent=5 // pred_check_branch
        %233 = sbr.rel (%p230) target = $region28
      $region27: #{tpu_custom_call.1} parent=5 // pred_region
        %s234 = ssub.s32 %s17, 1
        %s235 = smul.u32 %s26, 2
        %s236 = sadd.s32 %s235, %s27
        %p237 = scmp.lt.s32.totalorder %s236, 2
        %s238 = scalar_select %p237, %s236, 2
        %s239 = smul.u32 2, %s238
        %p240 = scmp.lt.s32.totalorder %s239, 5
        %s241 = scalar_select %p240, %s239, 5
        %s242 = smul.addr %s241, 8
        %s243 = scalar_lea.vmem %s0, %s242
        %p244 = pneg %p63
        %p245 = pneg %p60
        %s246 = smul.u32 %s26, 2
        %s247 = sadd.s32 %s246, %s27
        %p248 = scmp.lt.s32.totalorder %s247, 2
        %s249 = scalar_select %p248, %s247, 2
        %s250 = smul.u32 2, %s249
        %p251 = scmp.lt.s32.totalorder %s250, 5
        %s252 = scalar_select %p251, %s250, 5
        %s253 = smul.addr %s252, 8
        %s254 = scalar_lea.vmem %s1, %s253
        %p255 = pneg %p97
        %p256 = pneg %p94
        %p257 = pneg %p123
        %p258 = pneg %p120
        %s259 = sand.u32 %s110, 1
        %s260 = scalar_lea.sflag [#allocation3], %s259
        %s261 = sand.u32 %s110, 1
        %s262 = smul.addr %s261, 8
        %s263 = scalar_lea.vmem [#allocation2], %s262
        %p264 = pneg %p149
        %p265 = pneg %p146
        %s266 = sand.u32 %s22, 1
        %s267 = scalar_lea.sflag [#allocation5], %s266
        %s268 = sand.u32 %s136, 1
        %s269 = smul.addr %s268, 8
        %s270 = scalar_lea.vmem [#allocation4], %s269
        %p271 = pneg %p175
        %p272 = pneg %p172
        %s273 = sand.u32 %s22, 1
        %s274 = scalar_lea.sflag [#allocation5], %s273
        %s275 = sand.u32 %s162, 1
        %s276 = smul.addr %s275, 8
        %s277 = scalar_lea.vmem [#allocation6], %s276
        %s278 = smul.u32 %s26, 2
        %s279 = sadd.s32 %s278, %s27
        %p280 = scmp.lt.s32.totalorder %s279, 2
        %s281 = scalar_select %p280, %s279, 2
        %s282 = smul.u32 2, %s281
        %p283 = scmp.lt.s32.totalorder %s282, 5
        %s284 = scalar_select %p283, %s282, 5
        %s285 = smul.addr %s284, 8
        %s286 = scalar_lea.vmem %s0, %s285
        %s287 = smul.u32 %s26, 2
        %s288 = sadd.s32 %s287, %s27
        %p289 = scmp.lt.s32.totalorder %s288, 2
        %s290 = scalar_select %p289, %s288, 2
        %s291 = smul.u32 2, %s290
        %s292 = smul.u32 %s26, 2
        %s293 = sadd.s32 %s292, %s27
        %p294 = scmp.lt.s32.totalorder %s293, 2
        %s295 = scalar_select %p294, %s293, 2
        %s296 = smul.u32 2, %s295
        %p297 = scmp.lt.s32.totalorder %s296, 5
        %s298 = scalar_select %p297, %s296, 5
        %s299 = smul.addr %s298, 8
        %s300 = scalar_lea.vmem %s1, %s299
        %s301 = smul.u32 %s26, 2
        %s302 = sadd.s32 %s301, %s27
        %p303 = scmp.lt.s32.totalorder %s302, 2
        %s304 = scalar_select %p303, %s302, 2
        %s305 = smul.u32 2, %s304
        %p306 = scmp.eq.s32.totalorder %s27, 0
        // Predicated region
        $region29: #{tpu_custom_call.1} parent=27 // pred_check
          %p307 = pneg %p306
        $region30: #{tpu_custom_call.1} parent=27 // pred_check_branch
          %309 = sbr.rel (%p307) target = $region32
        $region31: #{tpu_custom_call.1} parent=27 // pred_region
          %vm310 = vcmask 146432
          %311 = vst.msk [vmem:[%s263] sm:$0xff] %vm310, 0.0
          %312 = vst.msk [vmem:[%s270] sm:$0xff] %vm310, 0.0
          %313 = vst.msk [vmem:[%s277] sm:$0xff] %vm310, 0.0
        $region32: #{tpu_custom_call.1} parent=27 // pred_fallthru
          _
        %s314 = smul.u32 %s26, 2
        %s315 = sadd.s32 %s314, %s27
        %s316 = sadd.s32 %s315, 1
        %s317 = smul.u32 %s316, 16
        %p318 = scmp.gt.s32.totalorder %s317, 45
        // Predicated region
        $region33: #{tpu_custom_call.1} parent=27 // pred_check
          %p319 = pneg %p318
        $region34: #{tpu_custom_call.1} parent=27 // pred_check_branch
          %321 = sbr.rel (%p319) target = $region36
        $region35: #{tpu_custom_call.1} parent=27 // pred_region
          %v322 = vld [vmem:[%s286] sm:$0xff]
          %v323 = vld [vmem:[%s286 + $0x8] sm:$0xff]
          %v324 = vld [vmem:[%s300] sm:$0xff]
          %v325 = vld [vmem:[%s300 + $0x8] sm:$0xff]
          %vm326 = vcmask 146432
          %v327 = vsel %vm326, %v322, -inf
          %328 = vmax.xlane.f32.xlu0 %v327
          %v329 = vpop.xlane.xlu0 %328
          %v330 = vsel %vm326, %v323, -inf
          %331 = vmax.xlane.f32.xlu0 %v330
          %v332 = vpop.xlane.xlu0 %331
          %v333 = vsub.f32 %v322, %v329
          %v334 = vsub.f32 %v323, %v332
          %v335 = vmul.f32 %v333, 1.442695
          %v336 = vpow.pop %v335
          %v337 = vmul.f32 %v334, 1.442695
          %v338 = vpow.pop %v337
          %v339 = vsel %vm326, %v336, 0.0
          %340 = vadd.xlane.f32.xlu0 %v339
          %v341 = vpop.xlane.xlu0 %340
          %v342 = vsel %vm326, %v338, 0.0
          %343 = vadd.xlane.f32.xlu0 %v342
          %v344 = vpop.xlane.xlu0 %343
          %v345 = vrcp.pop %v341
          %v346 = vrcp.pop %v344
          %v347 = vmul.f32 %v336, %v345
          %v348 = vmul.f32 %v338, %v346
          %v349 = vlaneseq
          %v350 = vand.u32 %v349, 127
          %351 = vset.pattern.permute.xlu0 0
          %352 = vperm.xlu0 %351, %v324
          %v353 = vpop.permute.xlu0 %352
          %354 = vset.pattern.permute.xlu0 0
          %355 = vperm.xlu0 %354, %v325
          %v356 = vpop.permute.xlu0 %355
          %vm357 = vcmp.eq.s32.totalorder %v350, %v353
          %vm358 = vcmp.eq.s32.totalorder %v350, %v356
          %s359 = smul.u32 %s315, 16
          %v360 = vlaneseq
          %v361 = vshrl.u32 %v360, 7
          %v362 = vadd.s32 %v361, 8
          %v363 = vstv %s359
          %v364 = vadd.s32 %v363, %v361
          %v365 = vadd.s32 %v363, %v362
          %vm366 = vcmp.lt.s32.totalorder %v364, 45
          %vm367 = vcmp.lt.s32.totalorder %v365, 45
          %v368 = vsel %vm366, 1, 0
          %v369 = vsel %vm367, 1, 0
          %vm370 = vcmp.eq.s32.totalorder %v368, 1
          %vm371 = vcmp.eq.s32.totalorder %v369, 1
          %v372 = vsel %vm370, %v347, 0.0
          %v373 = vsel %vm371, %v348, 0.0
          %vm374 = vmand %vm357, %vm370
          %vm375 = vmand %vm358, %vm371
          %v376 = vsel %vm374, %v372, 0.0
          %v377 = vsel %vm375, %v373, 0.0
          %v378 = vsel %vm374, 1.0, 0.0
          %v379 = vsel %vm375, 1.0, 0.0
          %v380 = vld [vmem:[%s263] sm:$0xff]
          %v381 = vsel %vm326, %v376, 0.0
          %v382 = vsel %vm326, %v377, 0.0
          %v383 = vadd.f32 %v381, %v382
          %v384 = vadd.f32 %v380, %v383
          %385 = vst.msk [vmem:[%s263] sm:$0xff] %vm326, %v384
          %v386 = vld [vmem:[%s270] sm:$0xff]
          %v387 = vsel %vm326, %v372, 0.0
          %v388 = vsel %vm326, %v373, 0.0
          %v389 = vadd.f32 %v387, %v388
          %v390 = vadd.f32 %v386, %v389
          %391 = vst.msk [vmem:[%s270] sm:$0xff] %vm326, %v390
          %v392 = vld [vmem:[%s277] sm:$0xff]
          %v393 = vsel %vm326, %v378, 0.0
          %v394 = vsel %vm326, %v379, 0.0
          %v395 = vadd.f32 %v393, %v394
          %v396 = vadd.f32 %v392, %v395
          %397 = vst.msk [vmem:[%s277] sm:$0xff] %vm326, %v396
        $region36: #{tpu_custom_call.1} parent=27 // pred_fallthru
          _
        %p398 = scmp.le.s32.totalorder %s317, 45
        // Predicated region
        $region37: #{tpu_custom_call.1} parent=27 // pred_check
          %p399 = pneg %p398
        $region38: #{tpu_custom_call.1} parent=27 // pred_check_branch
          %401 = sbr.rel (%p399) target = $region40
        $region39: #{tpu_custom_call.1} parent=27 // pred_region
          %v402 = vld [vmem:[%s286] sm:$0xff]
          %v403 = vld [vmem:[%s286 + $0x8] sm:$0xff]
          %v404 = vld [vmem:[%s300] sm:$0xff]
          %v405 = vld [vmem:[%s300 + $0x8] sm:$0xff]
          %vm406 = vcmask 146432
          %v407 = vsel %vm406, %v402, -inf
          %408 = vmax.xlane.f32.xlu0 %v407
          %v409 = vpop.xlane.xlu0 %408
          %v410 = vsel %vm406, %v403, -inf
          %411 = vmax.xlane.f32.xlu0 %v410
          %v412 = vpop.xlane.xlu0 %411
          %v413 = vsub.f32 %v402, %v409
          %v414 = vsub.f32 %v403, %v412
          %v415 = vmul.f32 %v413, 1.442695
          %v416 = vpow.pop %v415
          %v417 = vmul.f32 %v414, 1.442695
          %v418 = vpow.pop %v417
          %v419 = vsel %vm406, %v416, 0.0
          %420 = vadd.xlane.f32.xlu0 %v419
          %v421 = vpop.xlane.xlu0 %420
          %v422 = vsel %vm406, %v418, 0.0
          %423 = vadd.xlane.f32.xlu0 %v422
          %v424 = vpop.xlane.xlu0 %423
          %v425 = vrcp.pop %v421
          %v426 = vrcp.pop %v424
          %v427 = vmul.f32 %v416, %v425
          %v428 = vmul.f32 %v418, %v426
          %v429 = vlaneseq
          %v430 = vand.u32 %v429, 127
          %431 = vset.pattern.permute.xlu0 0
          %432 = vperm.xlu0 %431, %v404
          %v433 = vpop.permute.xlu0 %432
          %434 = vset.pattern.permute.xlu0 0
          %435 = vperm.xlu0 %434, %v405
          %v436 = vpop.permute.xlu0 %435
          %vm437 = vcmp.eq.s32.totalorder %v430, %v433
          %vm438 = vcmp.eq.s32.totalorder %v430, %v436
          %v439 = vsel %vm437, %v427, 0.0
          %v440 = vsel %vm438, %v428, 0.0
          %v441 = vsel %vm437, 1.0, 0.0
          %v442 = vsel %vm438, 1.0, 0.0
          %v443 = vld [vmem:[%s263] sm:$0xff]
          %v444 = vsel %vm406, %v439, 0.0
          %v445 = vsel %vm406, %v440, 0.0
          %v446 = vadd.f32 %v444, %v445
          %v447 = vadd.f32 %v443, %v446
          %448 = vst.msk [vmem:[%s263] sm:$0xff] %vm406, %v447
          %v449 = vld [vmem:[%s270] sm:$0xff]
          %v450 = vsel %vm406, %v427, 0.0
          %v451 = vsel %vm406, %v428, 0.0
          %v452 = vadd.f32 %v450, %v451
          %v453 = vadd.f32 %v449, %v452
          %454 = vst.msk [vmem:[%s270] sm:$0xff] %vm406, %v453
          %v455 = vld [vmem:[%s277] sm:$0xff]
          %v456 = vsel %vm406, %v441, 0.0
          %v457 = vsel %vm406, %v442, 0.0
          %v458 = vadd.f32 %v456, %v457
          %v459 = vadd.f32 %v455, %v458
          %460 = vst.msk [vmem:[%s277] sm:$0xff] %vm406, %v459
        $region40: #{tpu_custom_call.1} parent=27 // pred_fallthru
          _
        %s461 = sand.u32 %s110, 1
        %s462 = scalar_lea.sflag [#allocation3], %s461
        %s463 = sand.u32 %s110, 1
        %s464 = smul.addr %s463, 8
        %s465 = scalar_lea.vmem [#allocation2], %s464
        %s466 = sand.u32 %s22, 1
        %s467 = scalar_lea.sflag [#allocation5], %s466
        %s468 = sand.u32 %s136, 1
        %s469 = smul.addr %s468, 8
        %s470 = scalar_lea.vmem [#allocation4], %s469
        %s471 = sand.u32 %s22, 1
        %s472 = scalar_lea.sflag [#allocation5], %s471
        %s473 = sand.u32 %s162, 1
        %s474 = smul.addr %s473, 8
        %s475 = scalar_lea.vmem [#allocation6], %s474
        // Predicated region
        $region41: #{tpu_custom_call.1} parent=27 // pred_check
          %p476 = pneg %p120
        $region42: #{tpu_custom_call.1} parent=27 // pred_check_branch
          %478 = sbr.rel (%p476) target = $region44
        $region43: #{tpu_custom_call.1} parent=27 // pred_region
          %s480 = ssub.s32 128, 128
          %481 = vsyncadd %s462, %s480
          %s482 = smul.addr %s26, 128
          %s483 = scalar_lea.hbm %s2, %s482
          %s485 = sshll.u32 %s465, 4
          %s486 = int_to_ptr.vmem [resolvable:$true] %s485
          %488 = dma.vmem_to_hbm [thread:$0]  %s486, 128, %s483, %s462
        $region44: #{tpu_custom_call.1} parent=27 // pred_fallthru
          _
        // Predicated region
        $region45: #{tpu_custom_call.1} parent=27 // pred_check
          %p489 = pneg %p146
        $region46: #{tpu_custom_call.1} parent=27 // pred_check_branch
          %491 = sbr.rel (%p489) target = $region48
        $region47: #{tpu_custom_call.1} parent=27 // pred_region
          %s493 = ssub.s32 128, 128
          %494 = vsyncadd %s467, %s493
          %s495 = smul.addr %s26, 128
          %s496 = scalar_lea.hbm %s3, %s495
          %s498 = sshll.u32 %s470, 4
          %s499 = int_to_ptr.vmem [resolvable:$true] %s498
          %501 = dma.vmem_to_hbm [thread:$0]  %s499, 128, %s496, %s467
        $region48: #{tpu_custom_call.1} parent=27 // pred_fallthru
          _
        // Predicated region
        $region49: #{tpu_custom_call.1} parent=27 // pred_check
          %p502 = pneg %p172
        $region50: #{tpu_custom_call.1} parent=27 // pred_check_branch
          %504 = sbr.rel (%p502) target = $region52
        $region51: #{tpu_custom_call.1} parent=27 // pred_region
          %s506 = ssub.s32 128, 128
          %507 = vsyncadd %s472, %s506
          %s508 = smul.addr %s26, 128
          %s509 = scalar_lea.hbm %s4, %s508
          %s511 = sshll.u32 %s475, 4
          %s512 = int_to_ptr.vmem [resolvable:$true] %s511
          %514 = dma.vmem_to_hbm [thread:$0]  %s512, 128, %s509, %s472
        $region52: #{tpu_custom_call.1} parent=27 // pred_fallthru
          _
      $region28: #{tpu_custom_call.1} parent=5 // pred_fallthru
        _
      %p515 = scmp.le.s32.totalorder 2, %s17
      // Predicated region
      $region53: #{tpu_custom_call.1} parent=5 // pred_check
        %p516 = pneg %p515
      $region54: #{tpu_custom_call.1} parent=5 // pred_check_branch
        %518 = sbr.rel (%p516) target = $region56
      $region55: #{tpu_custom_call.1} parent=5 // pred_region
        %s519 = ssub.s32 %s17, 2
        // Predicated region
        $region57: #{tpu_custom_call.1} parent=55 // pred_check
          %p520 = pneg %p126
        $region58: #{tpu_custom_call.1} parent=55 // pred_check_branch
          %522 = sbr.rel (%p520) target = $region60
        $region59: #{tpu_custom_call.1} parent=55 // pred_region
          %s523 = sand.u32 %s111, 1
          %s524 = scalar_lea.sflag [#allocation3], %s523
          %s525 = sand.u32 %s111, 1
          %s526 = smul.addr %s525, 8
          %s527 = scalar_lea.vmem [#allocation2], %s526
          %528 = dma.done %s524, 128
        $region60: #{tpu_custom_call.1} parent=55 // pred_fallthru
          _
        // Predicated region
        $region61: #{tpu_custom_call.1} parent=55 // pred_check
          %p529 = pneg %p152
        $region62: #{tpu_custom_call.1} parent=55 // pred_check_branch
          %531 = sbr.rel (%p529) target = $region64
        $region63: #{tpu_custom_call.1} parent=55 // pred_region
          %s532 = sand.u32 %s23, 1
          %s533 = scalar_lea.sflag [#allocation5], %s532
          %s534 = sand.u32 %s137, 1
          %s535 = smul.addr %s534, 8
          %s536 = scalar_lea.vmem [#allocation4], %s535
          %537 = dma.done %s533, 128
        $region64: #{tpu_custom_call.1} parent=55 // pred_fallthru
          _
        // Predicated region
        $region65: #{tpu_custom_call.1} parent=55 // pred_check
          %p538 = pneg %p178
        $region66: #{tpu_custom_call.1} parent=55 // pred_check_branch
          %540 = sbr.rel (%p538) target = $region68
        $region67: #{tpu_custom_call.1} parent=55 // pred_region
          %s541 = sand.u32 %s23, 1
          %s542 = scalar_lea.sflag [#allocation5], %s541
          %s543 = sand.u32 %s163, 1
          %s544 = smul.addr %s543, 8
          %s545 = scalar_lea.vmem [#allocation6], %s544
          %546 = dma.done %s542, 128
        $region68: #{tpu_custom_call.1} parent=55 // pred_fallthru
          _
      $region56: #{tpu_custom_call.1} parent=5 // pred_fallthru
        _
    $region6: #{tpu_custom_call.1} parent=1 // loop_footer
      %s21 = sadd.s32 1, %s17
    $region7: #{tpu_custom_call.1} parent=1 // loop_footer_branch
      %16 = sbr.rel target = $region3
    $region8: #{tpu_custom_call.1} parent=1 // loop_exit
      _
    %547 = vsyncpa [#allocation3], 1
    %s548 = scalar_lea.sflag [#allocation3], 1
    %549 = vsyncpa %s548, 1
    %550 = vsyncpa [#allocation5], 1
    %s551 = scalar_lea.sflag [#allocation5], 1
    %552 = vsyncpa %s551, 1

</llo_original>
